<compile_context>
chip_gen: v7x
topology: tpu7x:2x2x1
jax: 0.10.0
libtpu: 0.0.40
codegen_flags: <defaults>
</compile_context>

<pallas_src>
import jax
import jax.numpy as jnp
import numpy as np
from jax import lax
from jax.experimental import pallas as pl
from jax.experimental.pallas import tpu as pltpu


NEG_INF = -1e30


def biattention_kernel(c_ref, q_ref, cmask_ref, qmask_ref,
                       cw_ref, qw_ref, cq_ref, bias_ref, out_ref):
    c = c_ref[0]                                   # (Lc, D) f32
    q = q_ref[0]                                   # (Lq, D) f32
    cm = cmask_ref[0]                              # (Lc, 1) f32  (column mask)
    qm = qmask_ref[0]                              # (1, Lq) f32  (row mask)
    cw = cw_ref[...]                               # (1, D)  == c_weight.weight
    qw = qw_ref[...]                               # (1, D)  == q_weight.weight
    cq = cq_ref[...]                               # (1, D)  == cq_weight
    bias = bias_ref[0, 0]                          # f32 scalar from SMEM

    # bf16 operands for all MXU matmuls (f32 accumulation).
    c_b = c.astype(jnp.bfloat16)
    q_b = q.astype(jnp.bfloat16)

    # Rank-1 similarity terms on the VPU (elementwise mul + lane reduce)
    # instead of two nearly-empty (D, 1) MXU matmuls.
    s0 = jnp.sum(c * cw, axis=-1, keepdims=True)                    # (Lc, 1)
    s1 = jnp.sum(q * qw, axis=-1, keepdims=True).T                  # (1, Lq)

    # Big similarity matmul: contract the feature axes directly (A @ B^T form,
    # no explicit transpose of q). bf16 operands, f32 accumulation.
    a_b = (c * cq).astype(jnp.bfloat16)
    s2 = lax.dot_general(a_b, q_b, (((1,), (1,)), ((), ())),
                         preferred_element_type=jnp.float32)        # (Lc, Lq)

    S = s2 + s0 + s1 + bias                                         # (Lc, Lq)

    # --- Row softmax over q positions (S1 of the reference), unnormalized ---
    # The normalization (divide by row sum) is folded into C2Q / Q2C below, so
    # S1 itself is never materialized.
    sq = jnp.where(qm > 0.0, S, NEG_INF)
    e1 = jnp.exp(sq - jnp.max(sq, axis=-1, keepdims=True))          # (Lc, Lq)
    inv_row = pl.reciprocal(jnp.sum(e1, axis=-1, keepdims=True),
                            approx=True)                            # (Lc, 1)
    e1_b = e1.astype(jnp.bfloat16)

    # --- Column softmax over c positions (S2^T of the reference), unnorm. ---
    # Softmax along axis 0 of S with the c mask as a column; P2 itself is
    # never materialized — its column normalization is folded into k_qd.
    sc = jnp.where(cm > 0.0, S, NEG_INF)
    e2 = jnp.exp(sc - jnp.max(sc, axis=0, keepdims=True))           # (Lc, Lq)
    inv_col = pl.reciprocal(jnp.sum(e2, axis=0, keepdims=True),
                            approx=True)                            # (1, Lq)
    e2_b = e2.astype(jnp.bfloat16)

    # C2Q = rowscale(e1 @ q, inv_row)
    C2Q = jnp.dot(e1_b, q_b,
                  preferred_element_type=jnp.float32) * inv_row     # (Lc, D)

    # Reassociated Q2C = S1 @ (S2 @ c): the small (Lq, D) intermediate
    # k_qd == P2^T @ c is computed by contracting the c axis of e2 directly
    # (no transpose, no (Lc, Lc) intermediate) and column-normalizing the
    # result rows.
    k_qd = lax.dot_general(e2_b, c_b, (((0,), (0,)), ((), ())),
                           preferred_element_type=jnp.float32)      # (Lq, D)
    k_qd = k_qd * inv_col.T                                         # (Lq, D)
    Q2C = jnp.dot(e1_b, k_qd.astype(jnp.bfloat16),
                  preferred_element_type=jnp.float32) * inv_row     # (Lc, D)

    D = c.shape[-1]
    # For the production module (d_model=128 -> D=256) these slice stores are
    # 128-lane aligned full-width vst's; only the tiny demo (D=32) pays masked
    # partial stores, which is noise at that size.
    out_ref[0, :, 0 * D:1 * D] = c
    out_ref[0, :, 1 * D:2 * D] = C2Q
    out_ref[0, :, 2 * D:3 * D] = c * C2Q
    out_ref[0, :, 3 * D:4 * D] = c * Q2C


def _round_up(x, m):
    return ((x + m - 1) // m) * m


def _usable_vmem_bytes():
    """Physical VMEM minus headroom for compiler scratch / pipeline buffers."""
    try:
        cap = int(pltpu.get_tpu_info().vmem_capacity_bytes)
    except Exception:
        cap = 64 << 20          # conservative fallback (v7x physical)
    headroom = max(8 << 20, cap // 8)   # 8 MiB on v7x, 16 MiB on v5e/v6e
    return cap - headroom               # ~56 MiB v7x, ~112 MiB v5e/v6e


@jax.jit
def biattention(c, q, c_mask, q_mask, cq_weight, c_weight, q_weight, bias):
    B, Lc, D = c.shape
    Lq = q.shape[1]

    # Pad Lq (the lane axis of S and both softmaxes) to a multiple of 128 and
    # Lc (a sublane axis everywhere, bf16-packed) to a multiple of 16. Padded
    # positions get mask=0 -> -1e30 logits -> exactly zero probability, so
    # valid outputs are unchanged; padded c rows are sliced off at the end.
    Lc_p = _round_up(Lc, 16)
    Lq_p = _round_up(Lq, 128)
    if Lc_p != Lc:
        c = jnp.pad(c, ((0, 0), (0, Lc_p - Lc), (0, 0)))
        c_mask = jnp.pad(c_mask, ((0, 0), (0, Lc_p - Lc)))
    if Lq_p != Lq:
        q = jnp.pad(q, ((0, 0), (0, Lq_p - Lq), (0, 0)))
        q_mask = jnp.pad(q_mask, ((0, 0), (0, Lq_p - Lq)))

    # Masks enter the kernel already in the layout they are broadcast with
    # (c mask as a column, q mask as a row) -> no in-kernel transpose needed.
    c_mask_col = c_mask.astype(jnp.float32).reshape(B, Lc_p, 1)
    q_mask_row = q_mask.astype(jnp.float32).reshape(B, 1, Lq_p)

    cq_w = cq_weight.reshape(1, D)        # (1, 1, 2d) -> (1, 2d)
    c_w = c_weight.reshape(1, D)          # nn.Linear(2d, 1).weight
    q_w = q_weight.reshape(1, D)
    bias2 = bias.reshape(1, 1).astype(jnp.float32)   # scalar -> SMEM

    # Per-step VMEM budget: double-buffered input/output blocks plus live
    # intermediates (S, e1, e2 f32 + two bf16 copies ~= 4 f32-equivalents of
    # (Lc, Lq), plus the small (Lc/Lq, D) results), clamped to the
    # generation-aware usable VMEM.
    itemsize = 4
    blocks = (Lc_p * D + Lq_p * D + Lc_p * 4 * D + Lc_p + Lq_p + 3 * D) * itemsize
    interm = (4 * Lc_p * Lq_p + 6 * (Lc_p + Lq_p) * D) * itemsize
    vmem_est = 2 * blocks + interm + (4 << 20)
    vmem_limit = int(min(max(vmem_est, 32 << 20), _usable_vmem_bytes()))

    out = pl.pallas_call(
        biattention_kernel,
        out_shape=jax.ShapeDtypeStruct((B, Lc_p, 4 * D), jnp.float32),
        grid=(B,),
        in_specs=[
            pl.BlockSpec((1, Lc_p, D), lambda b: (b, 0, 0)),
            pl.BlockSpec((1, Lq_p, D), lambda b: (b, 0, 0)),
            pl.BlockSpec((1, Lc_p, 1), lambda b: (b, 0, 0)),
            pl.BlockSpec((1, 1, Lq_p), lambda b: (b, 0, 0)),
            pl.BlockSpec((1, D), lambda b: (0, 0)),
            pl.BlockSpec((1, D), lambda b: (0, 0)),
            pl.BlockSpec((1, D), lambda b: (0, 0)),
            pl.BlockSpec(memory_space=pltpu.MemorySpace.SMEM),
        ],
        out_specs=pl.BlockSpec((1, Lc_p, 4 * D), lambda b: (b, 0, 0)),
        compiler_params=pltpu.CompilerParams(
            dimension_semantics=("parallel",),
            vmem_limit_bytes=vmem_limit),
    )(c, q, c_mask_col, q_mask_row, c_w, q_w, cq_w, bias2)

    return out[:, :Lc, :]


def biattention_reference(c, q, c_mask, q_mask, cq_weight, c_weight, q_weight, bias):
    """Pure-JAX f32 reference mirroring the PyTorch forward (dropout = identity)."""
    B, Lc, D = c.shape
    cm = c_mask.astype(jnp.float32)[:, None, :]          # (B, 1, Lc)
    qm = q_mask.astype(jnp.float32)[:, None, :]          # (B, 1, Lq)
    s0 = jnp.einsum("bld,d->bl", c, c_weight.reshape(-1))[:, :, None]   # (B, Lc, 1)
    s1 = jnp.einsum("bld,d->bl", q, q_weight.reshape(-1))[:, None, :]   # (B, 1, Lq)
    s2 = jnp.einsum("bld,bmd->blm", c * cq_weight.reshape(1, 1, D), q)  # (B, Lc, Lq)
    S = s0 + s1 + s2 + bias.reshape(())
    S1 = jax.nn.softmax(S * qm + (1.0 - qm) * NEG_INF, axis=-1)
    C2Q = jnp.einsum("blm,bmd->bld", S1, q)
    St = jnp.swapaxes(S, 1, 2)
    S2 = jax.nn.softmax(St * cm + (1.0 - cm) * NEG_INF, axis=-1)
    S12 = jnp.einsum("blm,bmn->bln", S1, S2)
    Q2C = jnp.einsum("bln,bnd->bld", S12, c)
    return jnp.concatenate((c, C2Q, c * C2Q, c * Q2C), axis=-1)


def xavier_uniform(key, shape, fan_in, fan_out, dtype=jnp.float32):
    bound = float(np.sqrt(6.0 / (fan_in + fan_out)))
    return jax.random.uniform(key, shape, dtype, minval=-bound, maxval=bound)


if __name__ == "__main__":
    # Small shapes consistent with the module (hidden = 2 * d_model).
    B, Lc, Lq = 2, 16, 8
    d_model_small = 16
    D = 2 * d_model_small                 # = 32

    key = jax.random.PRNGKey(0)
    k_c, k_q, k_cq, k_cw, k_qw = jax.random.split(key, 5)

    c = jax.random.normal(k_c, (B, Lc, D), jnp.float32)
    q = jax.random.normal(k_q, (B, Lq, D), jnp.float32)

    # Masks: 1.0 for valid positions, 0.0 for padding.
    c_lens = jnp.array([Lc, 10])
    q_lens = jnp.array([Lq, 5])
    c_mask = (jnp.arange(Lc)[None, :] < c_lens[:, None]).astype(jnp.float32)
    q_mask = (jnp.arange(Lq)[None, :] < q_lens[:, None]).astype(jnp.float32)

    # Deterministic parameter init (xavier_uniform like the module, bias = 0).
    cq_weight = xavier_uniform(k_cq, (1, 1, D), fan_in=D, fan_out=D)
    c_weight = xavier_uniform(k_cw, (1, D), fan_in=D, fan_out=1)
    q_weight = xavier_uniform(k_qw, (1, D), fan_in=D, fan_out=1)
    bias = jnp.zeros((1,), jnp.float32)

    out = biattention(c, q, c_mask, q_mask, cq_weight, c_weight, q_weight, bias)
    out = jax.block_until_ready(out)

    ref = biattention_reference(c, q, c_mask, q_mask, cq_weight, c_weight,
                                q_weight, bias)
    # Tolerance covers bf16 MXU operands (including the similarity matmul that
    # feeds exp) and the approximate reciprocals in the softmax normalizations.
    np.testing.assert_allclose(np.asarray(out), np.asarray(ref),
                               rtol=5e-2, atol=5e-2)

    assert out.shape == (B, Lc, 4 * D)
    print("KERNEL_OK")
</pallas_src>

<mosaic_0001>
module attributes {stable_mosaic.version = 11 : i64} {
  func.func @biattention_kernel(%arg0: i32, %arg1: memref<1x16x32xf32, #tpu.memory_space<vmem>>, %arg2: memref<1x128x32xf32, #tpu.memory_space<vmem>>, %arg3: memref<1x16x1xf32, #tpu.memory_space<vmem>>, %arg4: memref<1x1x128xf32, #tpu.memory_space<vmem>>, %arg5: memref<1x32xf32, #tpu.memory_space<vmem>>, %arg6: memref<1x32xf32, #tpu.memory_space<vmem>>, %arg7: memref<1x32xf32, #tpu.memory_space<vmem>>, %arg8: memref<1x1xf32, #tpu.memory_space<smem>>, %arg9: memref<1x16x128xf32, #tpu.memory_space<vmem>>) attributes {dimension_semantics = [#tpu.dimension_semantics<parallel>], iteration_bounds = array<i64: 2>, scalar_prefetch = 0 : i64, scratch_operands = 0 : i64, tpu.core_type = #tpu.core_type<tc>, window_params = [{transform_indices = @transform_0, window_bounds = array<i64: 1, 16, 32>}, {transform_indices = @transform_1, window_bounds = array<i64: 1, 128, 32>}, {transform_indices = @transform_2, window_bounds = array<i64: 1, 16, 1>}, {transform_indices = @transform_3, window_bounds = array<i64: 1, 1, 128>}, {pipeline_mode = #tpu.pipeline_mode<synchronous>, transform_indices = @transform_4, window_bounds = array<i64: 1, 32>}, {pipeline_mode = #tpu.pipeline_mode<synchronous>, transform_indices = @transform_5, window_bounds = array<i64: 1, 32>}, {pipeline_mode = #tpu.pipeline_mode<synchronous>, transform_indices = @transform_6, window_bounds = array<i64: 1, 32>}, {transform_indices = @transform_7, window_bounds = array<i64: 1, 1>}, {transform_indices = @transform_8, window_bounds = array<i64: 1, 16, 128>}]} {
    %c0 = arith.constant 0 : index
    %c0_0 = arith.constant 0 : index
    %c0_1 = arith.constant 0 : index
    %0 = vector.load %arg1[%c0, %c0_0, %c0_1] : memref<1x16x32xf32, #tpu.memory_space<vmem>>, vector<1x16x32xf32>
    %1 = vector.shape_cast %0 : vector<1x16x32xf32> to vector<16x32xf32>
    %c0_2 = arith.constant 0 : index
    %c0_3 = arith.constant 0 : index
    %c0_4 = arith.constant 0 : index
    %2 = vector.load %arg2[%c0_2, %c0_3, %c0_4] : memref<1x128x32xf32, #tpu.memory_space<vmem>>, vector<1x128x32xf32>
    %3 = vector.shape_cast %2 : vector<1x128x32xf32> to vector<128x32xf32>
    %c0_5 = arith.constant 0 : index
    %c0_6 = arith.constant 0 : index
    %c0_7 = arith.constant 0 : index
    %4 = vector.load %arg3[%c0_5, %c0_6, %c0_7] : memref<1x16x1xf32, #tpu.memory_space<vmem>>, vector<1x16x1xf32>
    %5 = vector.shape_cast %4 : vector<1x16x1xf32> to vector<16x1xf32>
    %c0_8 = arith.constant 0 : index
    %c0_9 = arith.constant 0 : index
    %c0_10 = arith.constant 0 : index
    %6 = vector.load %arg4[%c0_8, %c0_9, %c0_10] : memref<1x1x128xf32, #tpu.memory_space<vmem>>, vector<1x1x128xf32>
    %7 = vector.shape_cast %6 : vector<1x1x128xf32> to vector<1x128xf32>
    %c0_11 = arith.constant 0 : index
    %c0_12 = arith.constant 0 : index
    %8 = vector.load %arg5[%c0_11, %c0_12] : memref<1x32xf32, #tpu.memory_space<vmem>>, vector<1x32xf32>
    %c0_13 = arith.constant 0 : index
    %c0_14 = arith.constant 0 : index
    %9 = vector.load %arg6[%c0_13, %c0_14] : memref<1x32xf32, #tpu.memory_space<vmem>>, vector<1x32xf32>
    %c0_15 = arith.constant 0 : index
    %c0_16 = arith.constant 0 : index
    %10 = vector.load %arg7[%c0_15, %c0_16] : memref<1x32xf32, #tpu.memory_space<vmem>>, vector<1x32xf32>
    %c0_17 = arith.constant 0 : index
    %c0_18 = arith.constant 0 : index
    %11 = memref.load %arg8[%c0_17, %c0_18] : memref<1x1xf32, #tpu.memory_space<smem>>
    %12 = arith.truncf %1 : vector<16x32xf32> to vector<16x32xbf16>
    %13 = arith.truncf %3 : vector<128x32xf32> to vector<128x32xbf16>
    %14 = vector.broadcast %8 : vector<1x32xf32> to vector<16x32xf32>
    %15 = arith.mulf %1, %14 : vector<16x32xf32>
    %cst = arith.constant dense<0.000000e+00> : vector<16xf32>
    %16 = vector.multi_reduction <add>, %15, %cst [1] : vector<16x32xf32> to vector<16xf32>
    %17 = vector.shape_cast %16 : vector<16xf32> to vector<16x1xf32>
    %18 = vector.broadcast %9 : vector<1x32xf32> to vector<128x32xf32>
    %19 = arith.mulf %3, %18 : vector<128x32xf32>
    %cst_19 = arith.constant dense<0.000000e+00> : vector<128xf32>
    %20 = vector.multi_reduction <add>, %19, %cst_19 [1] : vector<128x32xf32> to vector<128xf32>
    %21 = vector.shape_cast %20 : vector<128xf32> to vector<128x1xf32>
    %22 = tpu.transpose %21, [1, 0] : vector<128x1xf32> -> vector<1x128xf32>
    %23 = vector.broadcast %10 : vector<1x32xf32> to vector<16x32xf32>
    %24 = arith.mulf %1, %23 : vector<16x32xf32>
    %25 = arith.truncf %24 : vector<16x32xf32> to vector<16x32xbf16>
    %cst_20 = arith.constant dense<0.000000e+00> : vector<16x128xf32>
    %26 = tpu.matmul %25, %13, %cst_20 {dimension_numbers = #tpu.dot_dimension_numbers<[1], [1], [0], [0], [0, 0, 1, 0], [], []>} : vector<16x32xbf16>, vector<128x32xbf16>, vector<16x128xf32> -> vector<16x128xf32>
    %27 = vector.broadcast %17 : vector<16x1xf32> to vector<16x128xf32>
    %28 = arith.addf %26, %27 : vector<16x128xf32>
    %29 = vector.broadcast %22 : vector<1x128xf32> to vector<16x128xf32>
    %30 = arith.addf %28, %29 : vector<16x128xf32>
    %31 = vector.broadcast %11 : f32 to vector<16x128xf32>
    %32 = arith.addf %30, %31 : vector<16x128xf32>
    %cst_21 = arith.constant 0.000000e+00 : f32
    %33 = vector.broadcast %cst_21 : f32 to vector<1x128xf32>
    %34 = arith.cmpf ogt, %7, %33 : vector<1x128xf32>
    %cst_22 = arith.constant -1.000000e+30 : f32
    %35 = vector.shape_cast %34 : vector<1x128xi1> to vector<1x128xi1>
    %36 = vector.broadcast %35 : vector<1x128xi1> to vector<16x128xi1>
    %37 = vector.broadcast %cst_22 : f32 to vector<16x128xf32>
    %38 = arith.select %36, %32, %37 : vector<16x128xi1>, vector<16x128xf32>
    %cst_23 = arith.constant dense<0xFF800000> : vector<16xf32>
    %39 = vector.multi_reduction <maximumf>, %38, %cst_23 [1] : vector<16x128xf32> to vector<16xf32>
    %40 = vector.shape_cast %39 : vector<16xf32> to vector<16x1xf32>
    %41 = vector.broadcast %40 : vector<16x1xf32> to vector<16x128xf32>
    %42 = arith.subf %38, %41 : vector<16x128xf32>
    %43 = math.exp %42 : vector<16x128xf32>
    %cst_24 = arith.constant dense<0.000000e+00> : vector<16xf32>
    %44 = vector.multi_reduction <add>, %43, %cst_24 [1] : vector<16x128xf32> to vector<16xf32>
    %45 = vector.shape_cast %44 : vector<16xf32> to vector<16x1xf32>
    %46 = tpu.reciprocal %45 {approx = true} : vector<16x1xf32> -> vector<16x1xf32>
    %47 = arith.truncf %43 : vector<16x128xf32> to vector<16x128xbf16>
    %cst_25 = arith.constant 0.000000e+00 : f32
    %48 = vector.broadcast %cst_25 : f32 to vector<16x1xf32>
    %49 = arith.cmpf ogt, %5, %48 : vector<16x1xf32>
    %cst_26 = arith.constant -1.000000e+30 : f32
    %50 = vector.shape_cast %49 : vector<16x1xi1> to vector<16x1xi1>
    %51 = vector.broadcast %50 : vector<16x1xi1> to vector<16x128xi1>
    %52 = vector.broadcast %cst_26 : f32 to vector<16x128xf32>
    %53 = arith.select %51, %32, %52 : vector<16x128xi1>, vector<16x128xf32>
    %cst_27 = arith.constant dense<0xFF800000> : vector<128xf32>
    %54 = vector.multi_reduction <maximumf>, %53, %cst_27 [0] : vector<16x128xf32> to vector<128xf32>
    %55 = vector.shape_cast %54 : vector<128xf32> to vector<1x128xf32>
    %56 = vector.broadcast %55 : vector<1x128xf32> to vector<16x128xf32>
    %57 = arith.subf %53, %56 : vector<16x128xf32>
    %58 = math.exp %57 : vector<16x128xf32>
    %cst_28 = arith.constant dense<0.000000e+00> : vector<128xf32>
    %59 = vector.multi_reduction <add>, %58, %cst_28 [0] : vector<16x128xf32> to vector<128xf32>
    %60 = vector.shape_cast %59 : vector<128xf32> to vector<1x128xf32>
    %61 = tpu.reciprocal %60 {approx = true} : vector<1x128xf32> -> vector<1x128xf32>
    %62 = arith.truncf %58 : vector<16x128xf32> to vector<16x128xbf16>
    %cst_29 = arith.constant dense<0.000000e+00> : vector<16x32xf32>
    %63 = tpu.matmul %47, %13, %cst_29 {dimension_numbers = #tpu.dot_dimension_numbers<[1], [0], [0], [1], [0, 0, 1, 1], [], []>} : vector<16x128xbf16>, vector<128x32xbf16>, vector<16x32xf32> -> vector<16x32xf32>
    %64 = vector.broadcast %46 : vector<16x1xf32> to vector<16x32xf32>
    %65 = arith.mulf %63, %64 : vector<16x32xf32>
    %cst_30 = arith.constant dense<0.000000e+00> : vector<128x32xf32>
    %66 = tpu.matmul %62, %12, %cst_30 {dimension_numbers = #tpu.dot_dimension_numbers<[0], [0], [1], [1], [0, 1, 1, 1], [], []>} : vector<16x128xbf16>, vector<16x32xbf16>, vector<128x32xf32> -> vector<128x32xf32>
    %67 = tpu.transpose %61, [1, 0] : vector<1x128xf32> -> vector<128x1xf32>
    %68 = vector.broadcast %67 : vector<128x1xf32> to vector<128x32xf32>
    %69 = arith.mulf %66, %68 : vector<128x32xf32>
    %70 = arith.truncf %69 : vector<128x32xf32> to vector<128x32xbf16>
    %cst_31 = arith.constant dense<0.000000e+00> : vector<16x32xf32>
    %71 = tpu.matmul %47, %70, %cst_31 {dimension_numbers = #tpu.dot_dimension_numbers<[1], [0], [0], [1], [0, 0, 1, 1], [], []>} : vector<16x128xbf16>, vector<128x32xbf16>, vector<16x32xf32> -> vector<16x32xf32>
    %72 = vector.broadcast %46 : vector<16x1xf32> to vector<16x32xf32>
    %73 = arith.mulf %71, %72 : vector<16x32xf32>
    %c0_32 = arith.constant 0 : index
    %c0_33 = arith.constant 0 : index
    %c0_34 = arith.constant 0 : index
    %74 = vector.load %arg9[%c0_32, %c0_33, %c0_34] : memref<1x16x128xf32, #tpu.memory_space<vmem>>, vector<1x16x32xf32>
    %75 = vector.shape_cast %74 : vector<1x16x32xf32> to vector<16x32xf32>
    %76 = vector.shape_cast %1 : vector<16x32xf32> to vector<1x16x32xf32>
    tpu.vector_store %arg9[%c0_32, %c0_33, %c0_34], %76 {strides = array<i32>} : memref<1x16x128xf32, #tpu.memory_space<vmem>>, vector<1x16x32xf32>,
    %c0_35 = arith.constant 0 : index
    %c0_36 = arith.constant 0 : index
    %c32 = arith.constant 32 : index
    %77 = vector.load %arg9[%c0_35, %c0_36, %c32] : memref<1x16x128xf32, #tpu.memory_space<vmem>>, vector<1x16x32xf32>
    %78 = vector.shape_cast %77 : vector<1x16x32xf32> to vector<16x32xf32>
    %79 = vector.shape_cast %65 : vector<16x32xf32> to vector<1x16x32xf32>
    tpu.vector_store %arg9[%c0_35, %c0_36, %c32], %79 {strides = array<i32>} : memref<1x16x128xf32, #tpu.memory_space<vmem>>, vector<1x16x32xf32>,
    %80 = arith.mulf %1, %65 : vector<16x32xf32>
    %c0_37 = arith.constant 0 : index
    %c0_38 = arith.constant 0 : index
    %c64 = arith.constant 64 : index
    %81 = vector.load %arg9[%c0_37, %c0_38, %c64] : memref<1x16x128xf32, #tpu.memory_space<vmem>>, vector<1x16x32xf32>
    %82 = vector.shape_cast %81 : vector<1x16x32xf32> to vector<16x32xf32>
    %83 = vector.shape_cast %80 : vector<16x32xf32> to vector<1x16x32xf32>
    tpu.vector_store %arg9[%c0_37, %c0_38, %c64], %83 {strides = array<i32>} : memref<1x16x128xf32, #tpu.memory_space<vmem>>, vector<1x16x32xf32>,
    %84 = arith.mulf %1, %73 : vector<16x32xf32>
    %c0_39 = arith.constant 0 : index
    %c0_40 = arith.constant 0 : index
    %c96 = arith.constant 96 : index
    %85 = vector.load %arg9[%c0_39, %c0_40, %c96] : memref<1x16x128xf32, #tpu.memory_space<vmem>>, vector<1x16x32xf32>
    %86 = vector.shape_cast %85 : vector<1x16x32xf32> to vector<16x32xf32>
    %87 = vector.shape_cast %84 : vector<16x32xf32> to vector<1x16x32xf32>
    tpu.vector_store %arg9[%c0_39, %c0_40, %c96], %87 {strides = array<i32>} : memref<1x16x128xf32, #tpu.memory_space<vmem>>, vector<1x16x32xf32>,
    return
  }
  func.func @transform_0(%arg0: i32) -> (i32, i32, i32) {
    %c0_i32 = arith.constant 0 : i32
    %c0_i32_0 = arith.constant 0 : i32
    %c0_i32_1 = arith.constant 0 : i32
    return %arg0, %c0_i32, %c0_i32_0 : i32, i32, i32
  }
  func.func @transform_1(%arg0: i32) -> (i32, i32, i32) {
    %c0_i32 = arith.constant 0 : i32
    %c0_i32_0 = arith.constant 0 : i32
    %c0_i32_1 = arith.constant 0 : i32
    return %arg0, %c0_i32, %c0_i32_0 : i32, i32, i32
  }
  func.func @transform_2(%arg0: i32) -> (i32, i32, i32) {
    %c0_i32 = arith.constant 0 : i32
    %c0_i32_0 = arith.constant 0 : i32
    %c0_i32_1 = arith.constant 0 : i32
    return %arg0, %c0_i32, %c0_i32_0 : i32, i32, i32
  }
  func.func @transform_3(%arg0: i32) -> (i32, i32, i32) {
    %c0_i32 = arith.constant 0 : i32
    %c0_i32_0 = arith.constant 0 : i32
    %c0_i32_1 = arith.constant 0 : i32
    return %arg0, %c0_i32, %c0_i32_0 : i32, i32, i32
  }
  func.func @transform_4(%arg0: i32) -> (i32, i32) {
    %c0_i32 = arith.constant 0 : i32
    %c0_i32_0 = arith.constant 0 : i32
    %c0_i32_1 = arith.constant 0 : i32
    return %c0_i32, %c0_i32_0 : i32, i32
  }
  func.func @transform_5(%arg0: i32) -> (i32, i32) {
    %c0_i32 = arith.constant 0 : i32
    %c0_i32_0 = arith.constant 0 : i32
    %c0_i32_1 = arith.constant 0 : i32
    return %c0_i32, %c0_i32_0 : i32, i32
  }
  func.func @transform_6(%arg0: i32) -> (i32, i32) {
    %c0_i32 = arith.constant 0 : i32
    %c0_i32_0 = arith.constant 0 : i32
    %c0_i32_1 = arith.constant 0 : i32
    return %c0_i32, %c0_i32_0 : i32, i32
  }
  func.func @transform_7(%arg0: i32) -> (i32, i32) {
    %c0_i32 = arith.constant 0 : i32
    %c0_i32_0 = arith.constant 0 : i32
    %c0_i32_1 = arith.constant 0 : i32
    return %c0_i32, %c0_i32_0 : i32, i32
  }
  func.func @transform_8(%arg0: i32) -> (i32, i32, i32) {
    %c0_i32 = arith.constant 0 : i32
    %c0_i32_0 = arith.constant 0 : i32
    %c0_i32_1 = arith.constant 0 : i32
    return %arg0, %c0_i32, %c0_i32_0 : i32, i32, i32
  }
}

</mosaic_0001>

<llo_original>
// kernel: biattention.1
$region0: #{biattention.1}
  #allocation0 [shape = 'u32[]', space=smem, size = 0x4, offset = 0x4, fixed_abs, tag = 'smem constant byte address 0x4 - core index']
  #allocation1 [shape = 'u32[144,128]{1,0:T(1,128)}', space=vmem, size = 0x12000, scoped, tag = 'internal scratch']
  #allocation2 [shape = 'f32[1,1]{1,0:T(1,128)S(6)}', space=smem, size = 0x200, scoped, tag = 'scoped memory for biattention.1']
  %s0 = inlined_call_operand.vmem [shape: f32[2,16,32], index: 0, kind: input, shape index: {}]
  %s1 = inlined_call_operand.vmem [shape: f32[2,128,32], index: 1, kind: input, shape index: {}]
  %s2 = inlined_call_operand.vmem [shape: f32[2,16,1], index: 2, kind: input, shape index: {}]
  %s3 = inlined_call_operand.vmem [shape: f32[2,1,128], index: 3, kind: input, shape index: {}]
  %s4 = inlined_call_operand.vmem [shape: f32[1,32], index: 4, kind: input, shape index: {}]
  %s5 = inlined_call_operand.vmem [shape: f32[1,32], index: 5, kind: input, shape index: {}]
  %s6 = inlined_call_operand.vmem [shape: f32[1,32], index: 6, kind: input, shape index: {}]
  %s7 = inlined_call_operand.<no memory space> [shape: f32[1,1], index: 7, kind: input, shape index: {}]
  %s8 = inlined_call_operand.hbm [shape: f32[2,16,128], index: 8, kind: output, shape index: {}]
  %s9 = sld [smem:[#allocation0]]
  $region65: #{biattention.1} parent=0
    _
  %s11 = ssub.s32 1, %s9
  %s12 = scalar_select 0, %s11, %s9
  %13 = sst [smem:[#allocation2]] %s7
  $region1: #{biattention.1} parent=0
    #allocation3 [shape = 'u8[16384]{0}', space=vmem, size = 0x4000, scoped, tag = 'output window, operand 0']
    #allocation4 [shape = 's32[2]{0}', space=sflag, size = 0x8, scoped, tag = 'scoped memory for biattention.1']
    %14 = vsyncpa [#allocation4], 0
    %s15 = scalar_lea.sflag [#allocation4], 1
    %16 = vsyncpa %s15, 0
    loop: start=0, step=1, limit=4
    $region2: #{biattention.1} parent=1 // loop_pre_header
      _
    $region3: #{biattention.1} parent=1 // loop_header
      %s18 = sphi 0, %s22
      %p19 = scmp.ge.s32.totalorder %s18, 4
      %s28 = sphi 0, %s30
      %s31 = sphi 0, %s28
      %s32 = sphi 0, %s31
      %s48 = sphi 0, %s32
      %s54 = sphi 0, %s56
      %s57 = sphi 0, %s54
      %s58 = sphi 0, %s57
      %s74 = sphi 0, %s58
      %s80 = sphi 0, %s82
      %s83 = sphi 0, %s80
      %s84 = sphi 0, %s83
      %s100 = sphi 0, %s84
      %s106 = sphi 0, %s108
      %s109 = sphi 0, %s106
      %s110 = sphi 0, %s109
      %s126 = sphi 0, %s110
      %s130 = sphi 0, %s130
      %s132 = sphi 0, %s130
      %s133 = sphi 0, %s132
      %s147 = sphi 0, %s133
      %s151 = sphi 0, %s151
      %s153 = sphi 0, %s151
      %s154 = sphi 0, %s153
      %s168 = sphi 0, %s154
      %s172 = sphi 0, %s172
      %s174 = sphi 0, %s172
      %s175 = sphi 0, %s174
      %s189 = sphi 0, %s175
      %s193 = sphi 0, %s193
      %s195 = sphi 0, %s193
      %s196 = sphi 0, %s195
      %s210 = sphi 0, %s196
      %s216 = sphi 0, %s218
      %s219 = sphi 0, %s216
      %s220 = sphi 0, %s219
      %s236 = sphi 0, %s220
    $region4: #{biattention.1} parent=1 // loop_header_branch
      %21 = sbr.rel (%p19) target = $region8
    $region5: #{biattention.1} parent=1 // loop_body
      %s23 = ssub.s32 %s18, 1
      %s24 = ssub.s32 %s18, 2
      %s25 = sadd.s32 %s18, 1
      %s26 = ssub.s32 %s18, %s25
      %p27 = scmp.eq.s32.totalorder %s26, 0
      %s29 = sadd.s32 %s28, 1
      %s30 = scalar_select %p27, %s28, %s29
      %p33 = pneg %p27
      %p34 = scmp.eq.s32.totalorder %s18, 1
      %p35 = por %p33, %p34
      %p36 = scmp.ne.s32.totalorder %s28, %s31
      %p37 = scmp.eq.s32.totalorder %s18, 0
      %p38 = por %p36, %p37
      %p39 = scmp.ne.s32.totalorder %s28, %s31
      %p40 = scmp.eq.s32.totalorder %s23, 1
      %p41 = por %p39, %p40
      %p42 = scmp.ne.s32.totalorder %s31, %s32
      %p43 = scmp.eq.s32.totalorder %s23, 0
      %p44 = por %p42, %p43
      %p45 = scmp.ne.s32.totalorder %s31, %s32
      %p46 = scmp.eq.s32.totalorder %s24, 1
      %p47 = por %p45, %p46
      %p49 = scmp.ne.s32.totalorder %s32, %s48
      %p50 = scmp.eq.s32.totalorder %s24, 0
      %p51 = por %p49, %p50
      %s52 = ssub.s32 %s18, %s25
      %p53 = scmp.eq.s32.totalorder %s52, 0
      %s55 = sadd.s32 %s54, 1
      %s56 = scalar_select %p53, %s54, %s55
      %p59 = pneg %p53
      %p60 = scmp.eq.s32.totalorder %s18, 1
      %p61 = por %p59, %p60
      %p62 = scmp.ne.s32.totalorder %s54, %s57
      %p63 = scmp.eq.s32.totalorder %s18, 0
      %p64 = por %p62, %p63
      %p65 = scmp.ne.s32.totalorder %s54, %s57
      %p66 = scmp.eq.s32.totalorder %s23, 1
      %p67 = por %p65, %p66
      %p68 = scmp.ne.s32.totalorder %s57, %s58
      %p69 = scmp.eq.s32.totalorder %s23, 0
      %p70 = por %p68, %p69
      %p71 = scmp.ne.s32.totalorder %s57, %s58
      %p72 = scmp.eq.s32.totalorder %s24, 1
      %p73 = por %p71, %p72
      %p75 = scmp.ne.s32.totalorder %s58, %s74
      %p76 = scmp.eq.s32.totalorder %s24, 0
      %p77 = por %p75, %p76
      %s78 = ssub.s32 %s18, %s25
      %p79 = scmp.eq.s32.totalorder %s78, 0
      %s81 = sadd.s32 %s80, 1
      %s82 = scalar_select %p79, %s80, %s81
      %p85 = pneg %p79
      %p86 = scmp.eq.s32.totalorder %s18, 1
      %p87 = por %p85, %p86
      %p88 = scmp.ne.s32.totalorder %s80, %s83
      %p89 = scmp.eq.s32.totalorder %s18, 0
      %p90 = por %p88, %p89
      %p91 = scmp.ne.s32.totalorder %s80, %s83
      %p92 = scmp.eq.s32.totalorder %s23, 1
      %p93 = por %p91, %p92
      %p94 = scmp.ne.s32.totalorder %s83, %s84
      %p95 = scmp.eq.s32.totalorder %s23, 0
      %p96 = por %p94, %p95
      %p97 = scmp.ne.s32.totalorder %s83, %s84
      %p98 = scmp.eq.s32.totalorder %s24, 1
      %p99 = por %p97, %p98
      %p101 = scmp.ne.s32.totalorder %s84, %s100
      %p102 = scmp.eq.s32.totalorder %s24, 0
      %p103 = por %p101, %p102
      %s104 = ssub.s32 %s18, %s25
      %p105 = scmp.eq.s32.totalorder %s104, 0
      %s107 = sadd.s32 %s106, 1
      %s108 = scalar_select %p105, %s106, %s107
      %p111 = pneg %p105
      %p112 = scmp.eq.s32.totalorder %s18, 1
      %p113 = por %p111, %p112
      %p114 = scmp.ne.s32.totalorder %s106, %s109
      %p115 = scmp.eq.s32.totalorder %s18, 0
      %p116 = por %p114, %p115
      %p117 = scmp.ne.s32.totalorder %s106, %s109
      %p118 = scmp.eq.s32.totalorder %s23, 1
      %p119 = por %p117, %p118
      %p120 = scmp.ne.s32.totalorder %s109, %s110
      %p121 = scmp.eq.s32.totalorder %s23, 0
      %p122 = por %p120, %p121
      %p123 = scmp.ne.s32.totalorder %s109, %s110
      %p124 = scmp.eq.s32.totalorder %s24, 1
      %p125 = por %p123, %p124
      %p127 = scmp.ne.s32.totalorder %s110, %s126
      %p128 = scmp.eq.s32.totalorder %s24, 0
      %p129 = por %p127, %p128
      %s131 = sadd.s32 %s130, 1
      %p134 = scmp.eq.s32.totalorder %s18, 1
      %p135 = scmp.ne.s32.totalorder %s130, %s132
      %p136 = scmp.eq.s32.totalorder %s18, 0
      %p137 = por %p135, %p136
      %p138 = scmp.ne.s32.totalorder %s130, %s132
      %p139 = scmp.eq.s32.totalorder %s23, 1
      %p140 = por %p138, %p139
      %p141 = scmp.ne.s32.totalorder %s132, %s133
      %p142 = scmp.eq.s32.totalorder %s23, 0
      %p143 = por %p141, %p142
      %p144 = scmp.ne.s32.totalorder %s132, %s133
      %p145 = scmp.eq.s32.totalorder %s24, 1
      %p146 = por %p144, %p145
      %p148 = scmp.ne.s32.totalorder %s133, %s147
      %p149 = scmp.eq.s32.totalorder %s24, 0
      %p150 = por %p148, %p149
      %s152 = sadd.s32 %s151, 1
      %p155 = scmp.eq.s32.totalorder %s18, 1
      %p156 = scmp.ne.s32.totalorder %s151, %s153
      %p157 = scmp.eq.s32.totalorder %s18, 0
      %p158 = por %p156, %p157
      %p159 = scmp.ne.s32.totalorder %s151, %s153
      %p160 = scmp.eq.s32.totalorder %s23, 1
      %p161 = por %p159, %p160
      %p162 = scmp.ne.s32.totalorder %s153, %s154
      %p163 = scmp.eq.s32.totalorder %s23, 0
      %p164 = por %p162, %p163
      %p165 = scmp.ne.s32.totalorder %s153, %s154
      %p166 = scmp.eq.s32.totalorder %s24, 1
      %p167 = por %p165, %p166
      %p169 = scmp.ne.s32.totalorder %s154, %s168
      %p170 = scmp.eq.s32.totalorder %s24, 0
      %p171 = por %p169, %p170
      %s173 = sadd.s32 %s172, 1
      %p176 = scmp.eq.s32.totalorder %s18, 1
      %p177 = scmp.ne.s32.totalorder %s172, %s174
      %p178 = scmp.eq.s32.totalorder %s18, 0
      %p179 = por %p177, %p178
      %p180 = scmp.ne.s32.totalorder %s172, %s174
      %p181 = scmp.eq.s32.totalorder %s23, 1
      %p182 = por %p180, %p181
      %p183 = scmp.ne.s32.totalorder %s174, %s175
      %p184 = scmp.eq.s32.totalorder %s23, 0
      %p185 = por %p183, %p184
      %p186 = scmp.ne.s32.totalorder %s174, %s175
      %p187 = scmp.eq.s32.totalorder %s24, 1
      %p188 = por %p186, %p187
      %p190 = scmp.ne.s32.totalorder %s175, %s189
      %p191 = scmp.eq.s32.totalorder %s24, 0
      %p192 = por %p190, %p191
      %s194 = sadd.s32 %s193, 1
      %p197 = scmp.eq.s32.totalorder %s18, 1
      %p198 = scmp.ne.s32.totalorder %s193, %s195
      %p199 = scmp.eq.s32.totalorder %s18, 0
      %p200 = por %p198, %p199
      %p201 = scmp.ne.s32.totalorder %s193, %s195
      %p202 = scmp.eq.s32.totalorder %s23, 1
      %p203 = por %p201, %p202
      %p204 = scmp.ne.s32.totalorder %s195, %s196
      %p205 = scmp.eq.s32.totalorder %s23, 0
      %p206 = por %p204, %p205
      %p207 = scmp.ne.s32.totalorder %s195, %s196
      %p208 = scmp.eq.s32.totalorder %s24, 1
      %p209 = por %p207, %p208
      %p211 = scmp.ne.s32.totalorder %s196, %s210
      %p212 = scmp.eq.s32.totalorder %s24, 0
      %p213 = por %p211, %p212
      %s214 = ssub.s32 %s18, %s25
      %p215 = scmp.eq.s32.totalorder %s214, 0
      %s217 = sadd.s32 %s216, 1
      %s218 = scalar_select %p215, %s216, %s217
      %p221 = pneg %p215
      %p222 = scmp.eq.s32.totalorder %s18, 1
      %p223 = por %p221, %p222
      %p224 = scmp.ne.s32.totalorder %s216, %s219
      %p225 = scmp.eq.s32.totalorder %s18, 0
      %p226 = por %p224, %p225
      %p227 = scmp.ne.s32.totalorder %s216, %s219
      %p228 = scmp.eq.s32.totalorder %s23, 1
      %p229 = por %p227, %p228
      %p230 = scmp.ne.s32.totalorder %s219, %s220
      %p231 = scmp.eq.s32.totalorder %s23, 0
      %p232 = por %p230, %p231
      %p233 = scmp.ne.s32.totalorder %s219, %s220
      %p234 = scmp.eq.s32.totalorder %s24, 1
      %p235 = por %p233, %p234
      %p237 = scmp.ne.s32.totalorder %s220, %s236
      %p238 = scmp.eq.s32.totalorder %s24, 0
      %p239 = por %p237, %p238
      %p240 = scmp.le.s32.totalorder 1, %s18
      %p241 = scmp.lt.s32.totalorder %s18, 3
      %p242 = pnand %p240, %p241
      %p243 = pneg %p242
      // Predicated region
      $region9: #{biattention.1} parent=5 // pred_check
        _
      $region10: #{biattention.1} parent=5 // pred_check_branch
        %245 = sbr.rel (%p242) target = $region12
      $region11: #{biattention.1} parent=5 // pred_region
        %s246 = ssub.s32 %s18, 1
        // Predicated region
        $region13: #{biattention.1} parent=11 // pred_check
          %p247 = pneg %p143
        $region14: #{biattention.1} parent=11 // pred_check_branch
          %249 = sbr.rel (%p247) target = $region16
        $region15: #{biattention.1} parent=11 // pred_region
          _
        $region16: #{biattention.1} parent=11 // pred_fallthru
          _
        // Predicated region
        $region17: #{biattention.1} parent=11 // pred_check
          %p250 = pneg %p164
        $region18: #{biattention.1} parent=11 // pred_check_branch
          %252 = sbr.rel (%p250) target = $region20
        $region19: #{biattention.1} parent=11 // pred_region
          _
        $region20: #{biattention.1} parent=11 // pred_fallthru
          _
        // Predicated region
        $region21: #{biattention.1} parent=11 // pred_check
          %p253 = pneg %p185
        $region22: #{biattention.1} parent=11 // pred_check_branch
          %255 = sbr.rel (%p253) target = $region24
        $region23: #{biattention.1} parent=11 // pred_region
          _
        $region24: #{biattention.1} parent=11 // pred_fallthru
          _
        // Predicated region
        $region25: #{biattention.1} parent=11 // pred_check
          %p256 = pneg %p206
        $region26: #{biattention.1} parent=11 // pred_check_branch
          %258 = sbr.rel (%p256) target = $region28
        $region27: #{biattention.1} parent=11 // pred_region
          _
        $region28: #{biattention.1} parent=11 // pred_fallthru
          _
      $region12: #{biattention.1} parent=5 // pred_fallthru
        _
      %p259 = scmp.lt.s32.totalorder %s18, 2
      // Predicated region
      $region29: #{biattention.1} parent=5 // pred_check
        %p260 = pneg %p259
      $region30: #{biattention.1} parent=5 // pred_check_branch
        %262 = sbr.rel (%p260) target = $region32
      $region31: #{biattention.1} parent=5 // pred_region
        // Predicated region
        $region33: #{biattention.1} parent=31 // pred_check
          %p263 = pneg %p38
        $region34: #{biattention.1} parent=31 // pred_check_branch
          %265 = sbr.rel (%p263) target = $region36
        $region35: #{biattention.1} parent=31 // pred_region
          %p266 = scmp.lt.s32.totalorder %s18, 1
          %s267 = scalar_select %p266, %s18, 1
          %s268 = smul.addr %s267, 2
          %s269 = smul.addr %s268, 8
          %s270 = scalar_lea.vmem %s0, %s269
        $region36: #{biattention.1} parent=31 // pred_fallthru
          _
        // Predicated region
        $region37: #{biattention.1} parent=31 // pred_check
          %p271 = pneg %p64
        $region38: #{biattention.1} parent=31 // pred_check_branch
          %273 = sbr.rel (%p271) target = $region40
        $region39: #{biattention.1} parent=31 // pred_region
          %p274 = scmp.lt.s32.totalorder %s18, 1
          %s275 = scalar_select %p274, %s18, 1
          %s276 = smul.addr %s275, 16
          %s277 = smul.addr %s276, 8
          %s278 = scalar_lea.vmem %s1, %s277
        $region40: #{biattention.1} parent=31 // pred_fallthru
          _
        // Predicated region
        $region41: #{biattention.1} parent=31 // pred_check
          %p279 = pneg %p90
        $region42: #{biattention.1} parent=31 // pred_check_branch
          %281 = sbr.rel (%p279) target = $region44
        $region43: #{biattention.1} parent=31 // pred_region
          %p282 = scmp.lt.s32.totalorder %s18, 1
          %s283 = scalar_select %p282, %s18, 1
          %s284 = smul.addr %s283, 2
          %s285 = smul.addr %s284, 8
          %s286 = scalar_lea.vmem %s2, %s285
        $region44: #{biattention.1} parent=31 // pred_fallthru
          _
        // Predicated region
        $region45: #{biattention.1} parent=31 // pred_check
          %p287 = pneg %p116
        $region46: #{biattention.1} parent=31 // pred_check_branch
          %289 = sbr.rel (%p287) target = $region48
        $region47: #{biattention.1} parent=31 // pred_region
          %p290 = scmp.lt.s32.totalorder %s18, 1
          %s291 = scalar_select %p290, %s18, 1
          %s292 = scalar_lea.vmem %s3, %s291
        $region48: #{biattention.1} parent=31 // pred_fallthru
          _
      $region32: #{biattention.1} parent=5 // pred_fallthru
        _
      %p293 = scmp.le.s32.totalorder 1, %s18
      %p294 = scmp.lt.s32.totalorder %s18, 3
      %p295 = pnand %p293, %p294
      %p296 = pneg %p295
      // Predicated region
      $region49: #{biattention.1} parent=5 // pred_check
        _
      $region50: #{biattention.1} parent=5 // pred_check_branch
        %298 = sbr.rel (%p295) target = $region52
      $region51: #{biattention.1} parent=5 // pred_region
        %s299 = ssub.s32 %s18, 1
        %p300 = scmp.lt.s32.totalorder %s23, 1
        %s301 = scalar_select %p300, %s23, 1
        %s302 = smul.addr %s301, 2
        %s303 = smul.addr %s302, 8
        %s304 = scalar_lea.vmem %s0, %s303
        %p305 = pneg %p44
        %p306 = pneg %p41
        %p307 = scmp.lt.s32.totalorder %s23, 1
        %s308 = scalar_select %p307, %s23, 1
        %s309 = smul.addr %s308, 16
        %s310 = smul.addr %s309, 8
        %s311 = scalar_lea.vmem %s1, %s310
        %p312 = pneg %p70
        %p313 = pneg %p67
        %p314 = scmp.lt.s32.totalorder %s23, 1
        %s315 = scalar_select %p314, %s23, 1
        %s316 = smul.addr %s315, 2
        %s317 = smul.addr %s316, 8
        %s318 = scalar_lea.vmem %s2, %s317
        %p319 = pneg %p96
        %p320 = pneg %p93
        %p321 = scmp.lt.s32.totalorder %s23, 1
        %s322 = scalar_select %p321, %s23, 1
        %s323 = scalar_lea.vmem %s3, %s322
        %p324 = pneg %p122
        %p325 = pneg %p119
        %p326 = pneg %p143
        %p327 = pneg %p140
        %p328 = pneg %p164
        %p329 = pneg %p161
        %p330 = pneg %p185
        %p331 = pneg %p182
        %p332 = pneg %p206
        %p333 = pneg %p203
        %p334 = pneg %p232
        %p335 = pneg %p229
        %s336 = sand.u32 %s219, 1
        %s337 = scalar_lea.sflag [#allocation4], %s336
        %s338 = sand.u32 %s219, 1
        %s339 = smul.addr %s338, 16
        %s340 = scalar_lea.vmem [#allocation3], %s339
        %p341 = scmp.lt.s32.totalorder %s23, 1
        %s342 = scalar_select %p341, %s23, 1
        %s343 = smul.addr %s342, 2
        %s344 = smul.addr %s343, 8
        %s345 = scalar_lea.vmem %s0, %s344
        %p346 = scmp.lt.s32.totalorder %s23, 1
        %s347 = scalar_select %p346, %s23, 1
        %s348 = smul.addr %s347, 16
        %s349 = smul.addr %s348, 8
        %s350 = scalar_lea.vmem %s1, %s349
        %p351 = scmp.lt.s32.totalorder %s23, 1
        %s352 = scalar_select %p351, %s23, 1
        %s353 = smul.addr %s352, 2
        %s354 = smul.addr %s353, 8
        %s355 = scalar_lea.vmem %s2, %s354
        %p356 = scmp.lt.s32.totalorder %s23, 1
        %s357 = scalar_select %p356, %s23, 1
        %s358 = scalar_lea.vmem %s3, %s357
        %v360 = vld [vmem:[%s345] sm:$0xff]
        %v361 = vld [vmem:[%s345 + $0x8] sm:$0xff]
        %v362 = vld [vmem:[%s350] sm:$0xff]
        %v363 = vld [vmem:[%s350 + $0x8] sm:$0xff]
        %v364 = vld [vmem:[%s350 + $0x10] sm:$0xff]
        %v365 = vld [vmem:[%s350 + $0x18] sm:$0xff]
        %v366 = vld [vmem:[%s350 + $0x20] sm:$0xff]
        %v367 = vld [vmem:[%s350 + $0x28] sm:$0xff]
        %v368 = vld [vmem:[%s350 + $0x30] sm:$0xff]
        %v369 = vld [vmem:[%s350 + $0x38] sm:$0xff]
        %v370 = vld [vmem:[%s350 + $0x40] sm:$0xff]
        %v371 = vld [vmem:[%s350 + $0x48] sm:$0xff]
        %v372 = vld [vmem:[%s350 + $0x50] sm:$0xff]
        %v373 = vld [vmem:[%s350 + $0x58] sm:$0xff]
        %v374 = vld [vmem:[%s350 + $0x60] sm:$0xff]
        %v375 = vld [vmem:[%s350 + $0x68] sm:$0xff]
        %v376 = vld [vmem:[%s350 + $0x70] sm:$0xff]
        %v377 = vld [vmem:[%s350 + $0x78] sm:$0xff]
        %v378 = vld [vmem:[%s355] sm:$0xff]
        %v379 = vld [vmem:[%s355 + $0x8] sm:$0xff]
        %v380 = vld [vmem:[%s358] sm:$0x1]
        %v381 = vld [vmem:[%s4] sm:$0x1]
        %v382 = vld [vmem:[%s5] sm:$0x1]
        %v383 = vld [vmem:[%s6] sm:$0x1]
        %s384 = sld [smem:[#allocation2]]
        %v385 = vpack.c.bf16 %v361, %v360
        %v386 = vpack.c.bf16 %v363, %v362
        %v387 = vpack.c.bf16 %v365, %v364
        %v388 = vpack.c.bf16 %v367, %v366
        %v389 = vpack.c.bf16 %v369, %v368
        %v390 = vpack.c.bf16 %v371, %v370
        %v391 = vpack.c.bf16 %v373, %v372
        %v392 = vpack.c.bf16 %v375, %v374
        %v393 = vpack.c.bf16 %v377, %v376
        %v395 = vlaneseq
        %v396 = vshrl.u32 %v395, 7
        %v397 = vsub.s32 0, %v396
        %v398 = vrot.slane %v381, %v397
        %v400 = vmul.f32 %v360, %v398
        %v401 = vmul.f32 %v361, %v398
        %vm402 = vcmask 261120
        %v403 = vsel %vm402, %v400, 0.0
        %404 = vadd.xlane.f32.xlu0 %v403
        %v405 = vpop.xlane.xlu0 %404
        %v406 = vsel %vm402, %v401, 0.0
        %407 = vadd.xlane.f32.xlu0 %v406
        %v408 = vpop.xlane.xlu0 %407
        %v410 = vlaneseq
        %v411 = vshrl.u32 %v410, 7
        %v412 = vsub.s32 0, %v411
        %v413 = vrot.slane %v382, %v412
        %v415 = vmul.f32 %v362, %v413
        %v416 = vmul.f32 %v363, %v413
        %v417 = vmul.f32 %v364, %v413
        %v418 = vmul.f32 %v365, %v413
        %v419 = vmul.f32 %v366, %v413
        %v420 = vmul.f32 %v367, %v413
        %v421 = vmul.f32 %v368, %v413
        %v422 = vmul.f32 %v369, %v413
        %v423 = vmul.f32 %v370, %v413
        %v424 = vmul.f32 %v371, %v413
        %v425 = vmul.f32 %v372, %v413
        %v426 = vmul.f32 %v373, %v413
        %v427 = vmul.f32 %v374, %v413
        %v428 = vmul.f32 %v375, %v413
        %v429 = vmul.f32 %v376, %v413
        %v430 = vmul.f32 %v377, %v413
        %v431 = vsel %vm402, %v415, 0.0
        %432 = vadd.xlane.f32.xlu0 %v431
        %v433 = vpop.xlane.xlu0 %432
        %v434 = vsel %vm402, %v416, 0.0
        %435 = vadd.xlane.f32.xlu0 %v434
        %v436 = vpop.xlane.xlu0 %435
        %v437 = vsel %vm402, %v417, 0.0
        %438 = vadd.xlane.f32.xlu0 %v437
        %v439 = vpop.xlane.xlu0 %438
        %v440 = vsel %vm402, %v418, 0.0
        %441 = vadd.xlane.f32.xlu0 %v440
        %v442 = vpop.xlane.xlu0 %441
        %v443 = vsel %vm402, %v419, 0.0
        %444 = vadd.xlane.f32.xlu0 %v443
        %v445 = vpop.xlane.xlu0 %444
        %v446 = vsel %vm402, %v420, 0.0
        %447 = vadd.xlane.f32.xlu0 %v446
        %v448 = vpop.xlane.xlu0 %447
        %v449 = vsel %vm402, %v421, 0.0
        %450 = vadd.xlane.f32.xlu0 %v449
        %v451 = vpop.xlane.xlu0 %450
        %v452 = vsel %vm402, %v422, 0.0
        %453 = vadd.xlane.f32.xlu0 %v452
        %v454 = vpop.xlane.xlu0 %453
        %v455 = vsel %vm402, %v423, 0.0
        %456 = vadd.xlane.f32.xlu0 %v455
        %v457 = vpop.xlane.xlu0 %456
        %v458 = vsel %vm402, %v424, 0.0
        %459 = vadd.xlane.f32.xlu0 %v458
        %v460 = vpop.xlane.xlu0 %459
        %v461 = vsel %vm402, %v425, 0.0
        %462 = vadd.xlane.f32.xlu0 %v461
        %v463 = vpop.xlane.xlu0 %462
        %v464 = vsel %vm402, %v426, 0.0
        %465 = vadd.xlane.f32.xlu0 %v464
        %v466 = vpop.xlane.xlu0 %465
        %v467 = vsel %vm402, %v427, 0.0
        %468 = vadd.xlane.f32.xlu0 %v467
        %v469 = vpop.xlane.xlu0 %468
        %v470 = vsel %vm402, %v428, 0.0
        %471 = vadd.xlane.f32.xlu0 %v470
        %v472 = vpop.xlane.xlu0 %471
        %v473 = vsel %vm402, %v429, 0.0
        %474 = vadd.xlane.f32.xlu0 %v473
        %v475 = vpop.xlane.xlu0 %474
        %v476 = vsel %vm402, %v430, 0.0
        %477 = vadd.xlane.f32.xlu0 %v476
        %v478 = vpop.xlane.xlu0 %477
        %479 = vxpose.xlu0.b32.start [1/16] %v433, 128
        %480 = vxpose.xlu0.b32.cont [2/16] %v436, 128
        %481 = vxpose.xlu0.b32.cont [3/16] %v439, 128
        %482 = vxpose.xlu0.b32.cont [4/16] %v442, 128
        %483 = vxpose.xlu0.b32.cont [5/16] %v445, 128
        %484 = vxpose.xlu0.b32.cont [6/16] %v448, 128
        %485 = vxpose.xlu0.b32.cont [7/16] %v451, 128
        %486 = vxpose.xlu0.b32.cont [8/16] %v454, 128
        %487 = vxpose.xlu0.b32.cont [9/16] %v457, 128
        %488 = vxpose.xlu0.b32.cont [10/16] %v460, 128
        %489 = vxpose.xlu0.b32.cont [11/16] %v463, 128
        %490 = vxpose.xlu0.b32.cont [12/16] %v466, 128
        %491 = vxpose.xlu0.b32.cont [13/16] %v469, 128
        %492 = vxpose.xlu0.b32.cont [14/16] %v472, 128
        %493 = vxpose.xlu0.b32.cont [15/16] %v475, 128
        %494 = vxpose.xlu0.b32.end [16/16] %v478, 128
        %v495 = vpop.trf.xlu0
        %v496 = vpop.trf.xlu0
        %v497 = vpop.trf.xlu0
        %v498 = vpop.trf.xlu0
        %v499 = vpop.trf.xlu0
        %v500 = vpop.trf.xlu0
        %v501 = vpop.trf.xlu0
        %v502 = vpop.trf.xlu0
        %v503 = vpop.trf.xlu0
        %v504 = vpop.trf.xlu0
        %v505 = vpop.trf.xlu0
        %v506 = vpop.trf.xlu0
        %v507 = vpop.trf.xlu0
        %v508 = vpop.trf.xlu0
        %v509 = vpop.trf.xlu0
        %v510 = vpop.trf.xlu0
        %v512 = vlaneseq
        %v513 = vshrl.u32 %v512, 7
        %v514 = vsub.s32 0, %v513
        %v515 = vrot.slane %v383, %v514
        %v517 = vmul.f32 %v360, %v515
        %v518 = vmul.f32 %v361, %v515
        %v519 = vpack.c.bf16 %v518, %v517
        %v521 = vsel %vm402, %v519, 0
        %v524 = vsel %vm402, %v386, 0
        %v527 = vsel %vm402, %v387, 0
        %v530 = vsel %vm402, %v388, 0
        %v533 = vsel %vm402, %v389, 0
        %v536 = vsel %vm402, %v390, 0
        %v539 = vsel %vm402, %v391, 0
        %v542 = vsel %vm402, %v392, 0
        %v545 = vsel %vm402, %v393, 0
        %547 = vmatprep.subr.bf16.mxu0 0
        %548 = vmatpush1.bf16.xpose.msra.mxu0 %v524
        %549 = vmatprep.subr.bf16.mxu0 0
        %550 = vmatpush1.bf16.xpose.msra.mxu0 %v527
        %551 = vmatprep.subr.bf16.mxu0 0
        %552 = vmatpush1.bf16.xpose.msra.mxu0 %v530
        %553 = vmatprep.subr.bf16.mxu0 0
        %554 = vmatpush1.bf16.xpose.msra.mxu0 %v533
        %555 = vmatprep.subr.bf16.mxu0 0
        %556 = vmatpush1.bf16.xpose.msra.mxu0 %v536
        %557 = vmatprep.subr.bf16.mxu0 0
        %558 = vmatpush1.bf16.xpose.msra.mxu0 %v539
        %559 = vmatprep.subr.bf16.mxu0 0
        %560 = vmatpush1.bf16.xpose.msra.mxu0 %v542
        %561 = vmatprep.subr.bf16.mxu0 0
        %562 = vmatpush1.bf16.xpose.msra.mxu0 %v545
        %563 = vmatprep.subr.bf16.mxu0 0
        %564 = vmatpush1.bf16.xpose.msra.mxu0 0
        %565 = vmatprep.subr.bf16.mxu0 0
        %566 = vmatpush1.bf16.xpose.msra.mxu0 0
        %567 = vmatprep.subr.bf16.mxu0 0
        %568 = vmatpush1.bf16.xpose.msra.mxu0 0
        %569 = vmatprep.subr.bf16.mxu0 0
        %570 = vmatpush1.bf16.xpose.msra.mxu0 0
        %571 = vmatprep.subr.bf16.mxu0 0
        %572 = vmatpush1.bf16.xpose.msra.mxu0 0
        %573 = vmatprep.subr.bf16.mxu0 0
        %574 = vmatpush1.bf16.xpose.msra.mxu0 0
        %575 = vmatprep.subr.bf16.mxu0 0
        %576 = vmatpush1.bf16.xpose.msra.mxu0 0
        %577 = vmatprep.subr.bf16.mxu0 0
        %578 = vmatpush1.bf16.xpose.msra.mxu0 0
        %579 = vmatprep.mubr.bf16.mxu0 0
        %580 = vmatmul.mubr.bf16.gmra.mrb[0].mxu0 %v521
        %v581 = vpop.f32.mrb[0].mxu0
        %v582 = vadd.f32 %v405, %v581
        %v583 = vpop.f32.mrb[0].mxu0
        %v584 = vpop.f32.mrb[0].mxu0
        %v585 = vadd.f32 %v408, %v584
        %v586 = vpop.f32.mrb[0].mxu0
        %587 = vdwg.mxu0
        %v588 = vlaneseq
        %v589 = vshrl.u32 %v588, 7
        %v590 = vsub.s32 0, %v589
        %v591 = vrot.slane %v495, %v590
        %v592 = vadd.f32 %v582, %v591
        %v593 = vadd.f32 %v585, %v591
        %v594 = vstv %s384
        %v595 = vadd.f32 %v592, %v594
        %v596 = vadd.f32 %v593, %v594
        %vm597 = vcmp.gt.f32.partialorder %v380, 0.0
        %v598 = vsel %vm597, 1, 0
        %v599 = vlaneseq
        %v600 = vshrl.u32 %v599, 7
        %v601 = vsub.s32 0, %v600
        %v602 = vrot.slane %v598, %v601
        %vm603 = vcmp.eq.s32.totalorder %v602, 1
        %v604 = vsel %vm603, %v595, -1e+30
        %v605 = vsel %vm603, %v596, -1e+30
        %606 = vmax.xlane.f32.xlu0 %v604
        %v607 = vpop.xlane.xlu0 %606
        %608 = vmax.xlane.f32.xlu0 %v605
        %v609 = vpop.xlane.xlu0 %608
        %v610 = vsub.f32 %v604, %v607
        %v611 = vsub.f32 %v605, %v609
        %v612 = vmul.f32 %v610, 1.442695
        %v613 = vpow.pop %v612
        %v614 = vmul.f32 %v611, 1.442695
        %v615 = vpow.pop %v614
        %616 = vadd.xlane.f32.xlu0 %v613
        %v617 = vpop.xlane.xlu0 %616
        %618 = vadd.xlane.f32.xlu0 %v615
        %v619 = vpop.xlane.xlu0 %618
        %v620 = vrcp.pop %v617
        %v621 = vrcp.pop %v619
        %v622 = vpack.c.bf16 %v615, %v613
        %vm623 = vcmp.gt.f32.partialorder %v378, 0.0
        %vm624 = vcmp.gt.f32.partialorder %v379, 0.0
        %v625 = vsel %vm623, 1, 0
        %v626 = vsel %vm624, 1, 0
        %627 = vset.pattern.permute.xlu0 0
        %628 = vperm.xlu0 %627, %v625
        %v629 = vpop.permute.xlu0 %628
        %630 = vset.pattern.permute.xlu0 0
        %631 = vperm.xlu0 %630, %v626
        %v632 = vpop.permute.xlu0 %631
        %vm633 = vcmp.eq.s32.totalorder %v629, 1
        %vm634 = vcmp.eq.s32.totalorder %v632, 1
        %v635 = vsel %vm633, %v595, -1e+30
        %v636 = vsel %vm634, %v596, -1e+30
        %v637 = vmax.f32 %v635, %v636
        %v638 = vrot.slane %v637, 4
        %v639 = vmax.f32 %v637, %v638
        %v640 = vrot.slane %v639, 2
        %v641 = vmax.f32 %v639, %v640
        %v642 = vrot.slane %v641, 1
        %v643 = vmax.f32 %v641, %v642
        %v644 = vsub.f32 %v635, %v643
        %v645 = vsub.f32 %v636, %v643
        %v646 = vmul.f32 %v644, 1.442695
        %v647 = vpow.pop %v646
        %v648 = vmul.f32 %v645, 1.442695
        %v649 = vpow.pop %v648
        %v650 = vadd.f32 %v647, %v649
        %v651 = vrot.slane %v650, 4
        %v652 = vadd.f32 %v650, %v651
        %v653 = vrot.slane %v652, 2
        %v654 = vadd.f32 %v652, %v653
        %v655 = vrot.slane %v654, 1
        %v656 = vadd.f32 %v654, %v655
        %v657 = vrcp.pop %v656
        %v658 = vpack.c.bf16 %v649, %v647
        %659 = vmatprep.subr.bf16.mxu0 0
        %660 = vmatpush1.bf16.msra.mxu0 %v386
        %661 = vmatprep.subr.bf16.mxu0 0
        %662 = vmatpush1.bf16.msra.mxu0 %v387
        %663 = vmatprep.subr.bf16.mxu0 0
        %664 = vmatpush1.bf16.msra.mxu0 %v388
        %665 = vmatprep.subr.bf16.mxu0 0
        %666 = vmatpush1.bf16.msra.mxu0 %v389
        %667 = vmatprep.subr.bf16.mxu0 0
        %668 = vmatpush1.bf16.msra.mxu0 %v390
        %669 = vmatprep.subr.bf16.mxu0 0
        %670 = vmatpush1.bf16.msra.mxu0 %v391
        %671 = vmatprep.subr.bf16.mxu0 0
        %672 = vmatpush1.bf16.msra.mxu0 %v392
        %673 = vmatprep.subr.bf16.mxu0 0
        %674 = vmatpush1.bf16.msra.mxu0 %v393
        %675 = vmatprep.subr.bf16.mxu0 0
        %676 = vmatpush1.bf16.msra.mxu0 0
        %677 = vmatprep.subr.bf16.mxu0 0
        %678 = vmatpush1.bf16.msra.mxu0 0
        %679 = vmatprep.subr.bf16.mxu0 0
        %680 = vmatpush1.bf16.msra.mxu0 0
        %681 = vmatprep.subr.bf16.mxu0 0
        %682 = vmatpush1.bf16.msra.mxu0 0
        %683 = vmatprep.subr.bf16.mxu0 0
        %684 = vmatpush1.bf16.msra.mxu0 0
        %685 = vmatprep.subr.bf16.mxu0 0
        %686 = vmatpush1.bf16.msra.mxu0 0
        %687 = vmatprep.subr.bf16.mxu0 0
        %688 = vmatpush1.bf16.msra.mxu0 0
        %689 = vmatprep.subr.bf16.mxu0 0
        %690 = vmatpush1.bf16.msra.mxu0 0
        %691 = vmatprep.mubr.bf16.mxu0 0
        %692 = vmatmul.mubr.bf16.gmra.mrb[0].mxu0 %v622
        %v693 = vpop.f32.mrb[0].mxu0
        %v694 = vadd.f32 0.0, %v693
        %v695 = vpop.f32.mrb[0].mxu0
        %v696 = vpop.f32.mrb[0].mxu0
        %v697 = vadd.f32 0.0, %v696
        %v698 = vpop.f32.mrb[0].mxu0
        %699 = vdwg.mxu0
        %v700 = vmul.f32 %v694, %v620
        %v701 = vmul.f32 %v697, %v621
        %702 = vxpose.xlu0.c.b16.start [1/8] %v658, 128
        %703 = vxpose.xlu0.c.b16.cont [2/8] 0, 128
        %704 = vxpose.xlu0.c.b16.cont [3/8] 0, 128
        %705 = vxpose.xlu0.c.b16.cont [4/8] 0, 128
        %706 = vxpose.xlu0.c.b16.cont [5/8] 0, 128
        %707 = vxpose.xlu0.c.b16.cont [6/8] 0, 128
        %708 = vxpose.xlu0.c.b16.cont [7/8] 0, 128
        %709 = vxpose.xlu0.c.b16.end [8/8] 0, 128
        %v710 = vpop.trf.xlu0
        %v711 = vpop.trf.xlu0
        %v712 = vpop.trf.xlu0
        %v713 = vpop.trf.xlu0
        %v714 = vpop.trf.xlu0
        %v715 = vpop.trf.xlu0
        %v716 = vpop.trf.xlu0
        %v717 = vpop.trf.xlu0
        %vm718 = vcmask 130048
        %v720 = vsel %vm718, %v710, 0
        %v723 = vsel %vm718, %v711, 0
        %v726 = vsel %vm718, %v712, 0
        %v729 = vsel %vm718, %v713, 0
        %v732 = vsel %vm718, %v714, 0
        %v735 = vsel %vm718, %v715, 0
        %v738 = vsel %vm718, %v716, 0
        %v741 = vsel %vm718, %v717, 0
        %743 = vmatprep.subr.bf16.mxu0 0
        %744 = vmatpush1.bf16.msra.mxu0 %v385
        %745 = vmatprep.subr.bf16.mxu0 0
        %746 = vmatpush1.bf16.msra.mxu0 0
        %747 = vmatprep.subr.bf16.mxu0 0
        %748 = vmatpush1.bf16.msra.mxu0 0
        %749 = vmatprep.subr.bf16.mxu0 0
        %750 = vmatpush1.bf16.msra.mxu0 0
        %751 = vmatprep.subr.bf16.mxu0 0
        %752 = vmatpush1.bf16.msra.mxu0 0
        %753 = vmatprep.subr.bf16.mxu0 0
        %754 = vmatpush1.bf16.msra.mxu0 0
        %755 = vmatprep.subr.bf16.mxu0 0
        %756 = vmatpush1.bf16.msra.mxu0 0
        %757 = vmatprep.subr.bf16.mxu0 0
        %758 = vmatpush1.bf16.msra.mxu0 0
        %759 = vmatprep.subr.bf16.mxu0 0
        %760 = vmatpush1.bf16.msra.mxu0 0
        %761 = vmatprep.subr.bf16.mxu0 0
        %762 = vmatpush1.bf16.msra.mxu0 0
        %763 = vmatprep.subr.bf16.mxu0 0
        %764 = vmatpush1.bf16.msra.mxu0 0
        %765 = vmatprep.subr.bf16.mxu0 0
        %766 = vmatpush1.bf16.msra.mxu0 0
        %767 = vmatprep.subr.bf16.mxu0 0
        %768 = vmatpush1.bf16.msra.mxu0 0
        %769 = vmatprep.subr.bf16.mxu0 0
        %770 = vmatpush1.bf16.msra.mxu0 0
        %771 = vmatprep.subr.bf16.mxu0 0
        %772 = vmatpush1.bf16.msra.mxu0 0
        %773 = vmatprep.subr.bf16.mxu0 0
        %774 = vmatpush1.bf16.msra.mxu0 0
        %775 = vmatprep.mubr.bf16.mxu0 0
        %776 = vmatmul.mubr.bf16.gmra.mrb[0].mxu0 %v720
        %v777 = vpop.f32.mrb[0].mxu0
        %v778 = vadd.f32 0.0, %v777
        %v779 = vpop.f32.mrb[0].mxu0
        %v780 = vpop.f32.mrb[0].mxu0
        %v781 = vadd.f32 0.0, %v780
        %v782 = vpop.f32.mrb[0].mxu0
        %783 = vmatprep.mubr.bf16.mxu0 0
        %784 = vmatmul.mubr.bf16.gmra.mrb[0].mxu0 %v723
        %v785 = vpop.f32.mrb[0].mxu0
        %v786 = vadd.f32 0.0, %v785
        %v787 = vpop.f32.mrb[0].mxu0
        %v788 = vpop.f32.mrb[0].mxu0
        %v789 = vadd.f32 0.0, %v788
        %v790 = vpop.f32.mrb[0].mxu0
        %791 = vmatprep.mubr.bf16.mxu0 0
        %792 = vmatmul.mubr.bf16.gmra.mrb[0].mxu0 %v726
        %v793 = vpop.f32.mrb[0].mxu0
        %v794 = vadd.f32 0.0, %v793
        %v795 = vpop.f32.mrb[0].mxu0
        %v796 = vpop.f32.mrb[0].mxu0
        %v797 = vadd.f32 0.0, %v796
        %v798 = vpop.f32.mrb[0].mxu0
        %799 = vmatprep.mubr.bf16.mxu0 0
        %800 = vmatmul.mubr.bf16.gmra.mrb[0].mxu0 %v729
        %v801 = vpop.f32.mrb[0].mxu0
        %v802 = vadd.f32 0.0, %v801
        %v803 = vpop.f32.mrb[0].mxu0
        %v804 = vpop.f32.mrb[0].mxu0
        %v805 = vadd.f32 0.0, %v804
        %v806 = vpop.f32.mrb[0].mxu0
        %807 = vmatprep.mubr.bf16.mxu0 0
        %808 = vmatmul.mubr.bf16.gmra.mrb[0].mxu0 %v732
        %v809 = vpop.f32.mrb[0].mxu0
        %v810 = vadd.f32 0.0, %v809
        %v811 = vpop.f32.mrb[0].mxu0
        %v812 = vpop.f32.mrb[0].mxu0
        %v813 = vadd.f32 0.0, %v812
        %v814 = vpop.f32.mrb[0].mxu0
        %815 = vmatprep.mubr.bf16.mxu0 0
        %816 = vmatmul.mubr.bf16.gmra.mrb[0].mxu0 %v735
        %v817 = vpop.f32.mrb[0].mxu0
        %v818 = vadd.f32 0.0, %v817
        %v819 = vpop.f32.mrb[0].mxu0
        %v820 = vpop.f32.mrb[0].mxu0
        %v821 = vadd.f32 0.0, %v820
        %v822 = vpop.f32.mrb[0].mxu0
        %823 = vmatprep.mubr.bf16.mxu0 0
        %824 = vmatmul.mubr.bf16.gmra.mrb[0].mxu0 %v738
        %v825 = vpop.f32.mrb[0].mxu0
        %v826 = vadd.f32 0.0, %v825
        %v827 = vpop.f32.mrb[0].mxu0
        %v828 = vpop.f32.mrb[0].mxu0
        %v829 = vadd.f32 0.0, %v828
        %v830 = vpop.f32.mrb[0].mxu0
        %831 = vmatprep.mubr.bf16.mxu0 0
        %832 = vmatmul.mubr.bf16.gmra.mrb[0].mxu0 %v741
        %v833 = vpop.f32.mrb[0].mxu0
        %v834 = vadd.f32 0.0, %v833
        %v835 = vpop.f32.mrb[0].mxu0
        %v836 = vpop.f32.mrb[0].mxu0
        %v837 = vadd.f32 0.0, %v836
        %v838 = vpop.f32.mrb[0].mxu0
        %839 = vdwg.mxu0
        %840 = vxpose.xlu0.b32.start [1/16] %v657, 128
        %841 = vxpose.xlu0.b32.cont [2/16] 0.0, 128
        %842 = vxpose.xlu0.b32.cont [3/16] 0.0, 128
        %843 = vxpose.xlu0.b32.cont [4/16] 0.0, 128
        %844 = vxpose.xlu0.b32.cont [5/16] 0.0, 128
        %845 = vxpose.xlu0.b32.cont [6/16] 0.0, 128
        %846 = vxpose.xlu0.b32.cont [7/16] 0.0, 128
        %847 = vxpose.xlu0.b32.cont [8/16] 0.0, 128
        %848 = vxpose.xlu0.b32.cont [9/16] 0.0, 128
        %849 = vxpose.xlu0.b32.cont [10/16] 0.0, 128
        %850 = vxpose.xlu0.b32.cont [11/16] 0.0, 128
        %851 = vxpose.xlu0.b32.cont [12/16] 0.0, 128
        %852 = vxpose.xlu0.b32.cont [13/16] 0.0, 128
        %853 = vxpose.xlu0.b32.cont [14/16] 0.0, 128
        %854 = vxpose.xlu0.b32.cont [15/16] 0.0, 128
        %855 = vxpose.xlu0.b32.end [16/16] 0.0, 128
        %v856 = vpop.trf.xlu0
        %v857 = vpop.trf.xlu0
        %v858 = vpop.trf.xlu0
        %v859 = vpop.trf.xlu0
        %v860 = vpop.trf.xlu0
        %v861 = vpop.trf.xlu0
        %v862 = vpop.trf.xlu0
        %v863 = vpop.trf.xlu0
        %v864 = vpop.trf.xlu0
        %v865 = vpop.trf.xlu0
        %v866 = vpop.trf.xlu0
        %v867 = vpop.trf.xlu0
        %v868 = vpop.trf.xlu0
        %v869 = vpop.trf.xlu0
        %v870 = vpop.trf.xlu0
        %v871 = vpop.trf.xlu0
        %873 = vset.pattern.permute.xlu0 0
        %874 = vperm.xlu0 %873, %v856
        %v875 = vpop.permute.xlu0 %874
        %878 = vset.pattern.permute.xlu0 0
        %879 = vperm.xlu0 %878, %v857
        %v880 = vpop.permute.xlu0 %879
        %883 = vset.pattern.permute.xlu0 0
        %884 = vperm.xlu0 %883, %v858
        %v885 = vpop.permute.xlu0 %884
        %888 = vset.pattern.permute.xlu0 0
        %889 = vperm.xlu0 %888, %v859
        %v890 = vpop.permute.xlu0 %889
        %893 = vset.pattern.permute.xlu0 0
        %894 = vperm.xlu0 %893, %v860
        %v895 = vpop.permute.xlu0 %894
        %898 = vset.pattern.permute.xlu0 0
        %899 = vperm.xlu0 %898, %v861
        %v900 = vpop.permute.xlu0 %899
        %903 = vset.pattern.permute.xlu0 0
        %904 = vperm.xlu0 %903, %v862
        %v905 = vpop.permute.xlu0 %904
        %908 = vset.pattern.permute.xlu0 0
        %909 = vperm.xlu0 %908, %v863
        %v910 = vpop.permute.xlu0 %909
        %913 = vset.pattern.permute.xlu0 0
        %914 = vperm.xlu0 %913, %v864
        %v915 = vpop.permute.xlu0 %914
        %918 = vset.pattern.permute.xlu0 0
        %919 = vperm.xlu0 %918, %v865
        %v920 = vpop.permute.xlu0 %919
        %923 = vset.pattern.permute.xlu0 0
        %924 = vperm.xlu0 %923, %v866
        %v925 = vpop.permute.xlu0 %924
        %928 = vset.pattern.permute.xlu0 0
        %929 = vperm.xlu0 %928, %v867
        %v930 = vpop.permute.xlu0 %929
        %933 = vset.pattern.permute.xlu0 0
        %934 = vperm.xlu0 %933, %v868
        %v935 = vpop.permute.xlu0 %934
        %938 = vset.pattern.permute.xlu0 0
        %939 = vperm.xlu0 %938, %v869
        %v940 = vpop.permute.xlu0 %939
        %943 = vset.pattern.permute.xlu0 0
        %944 = vperm.xlu0 %943, %v870
        %v945 = vpop.permute.xlu0 %944
        %948 = vset.pattern.permute.xlu0 0
        %949 = vperm.xlu0 %948, %v871
        %v950 = vpop.permute.xlu0 %949
        %v952 = vmul.f32 %v778, %v875
        %v953 = vmul.f32 %v781, %v880
        %v954 = vmul.f32 %v786, %v885
        %v955 = vmul.f32 %v789, %v890
        %v956 = vmul.f32 %v794, %v895
        %v957 = vmul.f32 %v797, %v900
        %v958 = vmul.f32 %v802, %v905
        %v959 = vmul.f32 %v805, %v910
        %v960 = vmul.f32 %v810, %v915
        %v961 = vmul.f32 %v813, %v920
        %v962 = vmul.f32 %v818, %v925
        %v963 = vmul.f32 %v821, %v930
        %v964 = vmul.f32 %v826, %v935
        %v965 = vmul.f32 %v829, %v940
        %v966 = vmul.f32 %v834, %v945
        %v967 = vmul.f32 %v837, %v950
        %v968 = vpack.c.bf16 %v953, %v952
        %v969 = vpack.c.bf16 %v955, %v954
        %v970 = vpack.c.bf16 %v957, %v956
        %v971 = vpack.c.bf16 %v959, %v958
        %v972 = vpack.c.bf16 %v961, %v960
        %v973 = vpack.c.bf16 %v963, %v962
        %v974 = vpack.c.bf16 %v965, %v964
        %v975 = vpack.c.bf16 %v967, %v966
        %976 = vmatprep.subr.bf16.mxu0 0
        %977 = vmatpush1.bf16.msra.mxu0 %v968
        %978 = vmatprep.subr.bf16.mxu0 0
        %979 = vmatpush1.bf16.msra.mxu0 %v969
        %980 = vmatprep.subr.bf16.mxu0 0
        %981 = vmatpush1.bf16.msra.mxu0 %v970
        %982 = vmatprep.subr.bf16.mxu0 0
        %983 = vmatpush1.bf16.msra.mxu0 %v971
        %984 = vmatprep.subr.bf16.mxu0 0
        %985 = vmatpush1.bf16.msra.mxu0 %v972
        %986 = vmatprep.subr.bf16.mxu0 0
        %987 = vmatpush1.bf16.msra.mxu0 %v973
        %988 = vmatprep.subr.bf16.mxu0 0
        %989 = vmatpush1.bf16.msra.mxu0 %v974
        %990 = vmatprep.subr.bf16.mxu0 0
        %991 = vmatpush1.bf16.msra.mxu0 %v975
        %992 = vmatprep.subr.bf16.mxu0 0
        %993 = vmatpush1.bf16.msra.mxu0 0
        %994 = vmatprep.subr.bf16.mxu0 0
        %995 = vmatpush1.bf16.msra.mxu0 0
        %996 = vmatprep.subr.bf16.mxu0 0
        %997 = vmatpush1.bf16.msra.mxu0 0
        %998 = vmatprep.subr.bf16.mxu0 0
        %999 = vmatpush1.bf16.msra.mxu0 0
        %1000 = vmatprep.subr.bf16.mxu0 0
        %1001 = vmatpush1.bf16.msra.mxu0 0
        %1002 = vmatprep.subr.bf16.mxu0 0
        %1003 = vmatpush1.bf16.msra.mxu0 0
        %1004 = vmatprep.subr.bf16.mxu0 0
        %1005 = vmatpush1.bf16.msra.mxu0 0
        %1006 = vmatprep.subr.bf16.mxu0 0
        %1007 = vmatpush1.bf16.msra.mxu0 0
        %1008 = vmatprep.mubr.bf16.mxu0 0
        %1009 = vmatmul.mubr.bf16.gmra.mrb[0].mxu0 %v622
        %v1010 = vpop.f32.mrb[0].mxu0
        %v1011 = vadd.f32 0.0, %v1010
        %v1012 = vpop.f32.mrb[0].mxu0
        %v1013 = vpop.f32.mrb[0].mxu0
        %v1014 = vadd.f32 0.0, %v1013
        %v1015 = vpop.f32.mrb[0].mxu0
        %1016 = vdwg.mxu0
        %v1017 = vmul.f32 %v1011, %v620
        %v1018 = vmul.f32 %v1014, %v621
        %1019 = vst.msk [vmem:[%s340] sm:$0xff] %vm402, %v360
        %1020 = vst.msk [vmem:[%s340 + $0x8] sm:$0xff] %vm402, %v361
        %1023 = vrot.lane.b32.xlu0 %v700, 32
        %v1024 = vpop.permute.xlu0 %1023
        %1025 = vrot.lane.b32.xlu0 %v701, 32
        %v1026 = vpop.permute.xlu0 %1025
        %vm1029 = vcmask 523520
        %1030 = vst.msk [vmem:[%s340] sm:$0xff] %vm1029, %v1024
        %1031 = vst.msk [vmem:[%s340 + $0x8] sm:$0xff] %vm1029, %v1026
        %v1032 = vmul.f32 %v360, %v700
        %v1033 = vmul.f32 %v361, %v701
        %1036 = vrot.lane.b32.xlu0 %v1032, 64
        %v1037 = vpop.permute.xlu0 %1036
        %1038 = vrot.lane.b32.xlu0 %v1033, 64
        %v1039 = vpop.permute.xlu0 %1038
        %vm1042 = vcmask 785920
        %1043 = vst.msk [vmem:[%s340] sm:$0xff] %vm1042, %v1037
        %1044 = vst.msk [vmem:[%s340 + $0x8] sm:$0xff] %vm1042, %v1039
        %v1045 = vmul.f32 %v360, %v1017
        %v1046 = vmul.f32 %v361, %v1018
        %1049 = vrot.lane.b32.xlu0 %v1045, 96
        %v1050 = vpop.permute.xlu0 %1049
        %1051 = vrot.lane.b32.xlu0 %v1046, 96
        %v1052 = vpop.permute.xlu0 %1051
        %vm1055 = vcmask 1048320
        %1056 = vst.msk [vmem:[%s340] sm:$0xff] %vm1055, %v1050
        %1057 = vst.msk [vmem:[%s340 + $0x8] sm:$0xff] %vm1055, %v1052
        %s1058 = sand.u32 %s219, 1
        %s1059 = scalar_lea.sflag [#allocation4], %s1058
        %s1060 = sand.u32 %s219, 1
        %s1061 = smul.addr %s1060, 16
        %s1062 = scalar_lea.vmem [#allocation3], %s1061
        // Predicated region
        $region53: #{biattention.1} parent=51 // pred_check
          %p1063 = pneg %p229
        $region54: #{biattention.1} parent=51 // pred_check_branch
          %1065 = sbr.rel (%p1063) target = $region56
        $region55: #{biattention.1} parent=51 // pred_region
          %s1067 = ssub.s32 256, 256
          %1068 = vsyncadd %s1059, %s1067
          %s1069 = smul.addr %s23, 2
          %s1070 = smul.addr %s1069, 128
          %s1071 = scalar_lea.hbm %s8, %s1070
          %s1072 = sshll.u32 %s1062, 4
          %s1073 = int_to_ptr.vmem [resolvable:$true] %s1072
          %1078 = dma.vmem_to_hbm [thread:$0]  %s1073, 256, %s1071, %s1059, 128, 128, 8
        $region56: #{biattention.1} parent=51 // pred_fallthru
          _
      $region52: #{biattention.1} parent=5 // pred_fallthru
        _
      %p1079 = scmp.le.s32.totalorder 2, %s18
      // Predicated region
      $region57: #{biattention.1} parent=5 // pred_check
        %p1080 = pneg %p1079
      $region58: #{biattention.1} parent=5 // pred_check_branch
        %1082 = sbr.rel (%p1080) target = $region60
      $region59: #{biattention.1} parent=5 // pred_region
        %s1083 = ssub.s32 %s18, 2
        // Predicated region
        $region61: #{biattention.1} parent=59 // pred_check
          %p1084 = pneg %p235
        $region62: #{biattention.1} parent=59 // pred_check_branch
          %1086 = sbr.rel (%p1084) target = $region64
        $region63: #{biattention.1} parent=59 // pred_region
          %s1087 = sand.u32 %s220, 1
          %s1088 = scalar_lea.sflag [#allocation4], %s1087
          %s1089 = sand.u32 %s220, 1
          %s1090 = smul.addr %s1089, 16
          %s1091 = scalar_lea.vmem [#allocation3], %s1090
          %1092 = dma.done %s1088, 256
        $region64: #{biattention.1} parent=59 // pred_fallthru
          _
      $region60: #{biattention.1} parent=5 // pred_fallthru
        _
    $region6: #{biattention.1} parent=1 // loop_footer
      %s22 = sadd.s32 1, %s18
    $region7: #{biattention.1} parent=1 // loop_footer_branch
      %17 = sbr.rel target = $region3
    $region8: #{biattention.1} parent=1 // loop_exit
      _
    %1093 = vsyncpa [#allocation4], 1
    %s1094 = scalar_lea.sflag [#allocation4], 1
    %1095 = vsyncpa %s1094, 1

</llo_original>
